<compile_context>
chip_gen: v5e
topology: v5e:2x2
jax: 0.10.0
libtpu: 0.0.40
codegen_flags: <defaults>
</compile_context>

<pallas_src>
import jax
import jax.numpy as jnp
import numpy as np
from jax.experimental import pallas as pl
from jax.experimental.pallas import tpu as pltpu

# ----- hyperparameters implied by the module (small & deterministic) -----
VOCAB_SIZE = 64          # len(token_to_index)
EMBEDDINGS_SIZE = 32     # vector_size
FILTERS_LENGTH = (2, 3, 4)
FILTERS_COUNT = 16
FC_OUTPUT = 32
N_LABELS = 4
BATCH = 2
SEQ_LEN = 16


def _round_up(x, m):
    return (x + m - 1) // m * m


# ----- derived kernel constants -----
MAX_F = max(FILTERS_LENGTH)                    # 4 taps after zero padding
N_FILTERS = len(FILTERS_LENGTH)                # 3
C3 = FILTERS_COUNT * N_FILTERS                 # 48 fused conv output channels
KV = MAX_F * VOCAB_SIZE                        # 256: multi-hot selector width
KE = MAX_F * EMBEDDINGS_SIZE                   # 128: im2col feature width
LANES = 128                                    # lane-dense pack / output width
T_POS = _round_up(SEQ_LEN - min(FILTERS_LENGTH) + 1, 8)   # 16 positions/sequence

# row offsets inside the packed f32 parameter slab (all 8-aligned)
ROW_W = 0                                      # (KV, C3)   fused embed@conv weight
ROW_FC = ROW_W + KV                            # (C3, FC_OUTPUT)
ROW_OUT = ROW_FC + C3                          # (FC_OUTPUT, LANES), cols 0:N_LABELS real
ROW_MASK = ROW_OUT + FC_OUTPUT                 # (T_POS, C3) additive valid-window mask
ROW_BCONV = _round_up(ROW_MASK + T_POS, 8)     # (1, C3)   fused conv bias
ROW_BFC = _round_up(ROW_BCONV + 1, 8)          # (1, FC_OUTPUT)
ROW_BOUT = _round_up(ROW_BFC + 1, 8)           # (1, LANES)
PACK_ROWS = _round_up(ROW_BOUT + 1, 8)         # 376 rows (~188 KiB slab)


def _make_kernel(batch_tile):
    m = batch_tile * T_POS                                   # rows = batch * position

    def kernel(tok_ref, w_ref, o_ref):
        """One batch tile.

        tok_ref: (m, 1) int32, 4 offset token ids packed 8 bits each
        w_ref:   (PACK_ROWS, 128) f32, packed parameters (resident across tiles)
        o_ref:   (batch_tile, 128) f32, lane-dense sigmoid outputs
        """
        packed = tok_ref[...]                                # (m, 1) int32
        col = jax.lax.broadcasted_iota(jnp.int32, (m, KV), 1)

        # multi-hot selector via boolean ORs (per-tap vocab blocks are disjoint)
        hit = col == (packed & 0xFF)
        for k in range(1, MAX_F):                            # static 3-iteration loop
            hit = hit | (col == ((packed >> (8 * k)) & 0xFF))
        sel = hit.astype(jnp.float32)                        # (m, 256)

        # embedding + all three convs as ONE flat 2-D MXU matmul (weights pre-fused)
        w_fused = w_ref[ROW_W:ROW_W + KV, 0:C3]              # (256, 48)
        conv = jnp.dot(sel, w_fused, preferred_element_type=jnp.float32)   # (m, 48)
        conv = conv + w_ref[ROW_BCONV:ROW_BCONV + 1, 0:C3]   # fused conv bias

        # mask positions past each filter's valid range (precomputed additive
        # 0 / -1e30 mask), then global max pool + ReLU
        mask = w_ref[ROW_MASK:ROW_MASK + T_POS, 0:C3]        # (16, 48)
        conv = conv.reshape(batch_tile, T_POS, C3) + mask[None, :, :]
        pooled = jnp.max(conv, axis=1)                       # (TB, 48)
        feat = jnp.maximum(pooled, 0.0)                      # relu(max) == max(relu)

        # FC + ReLU, output layer + sigmoid (lane-padded to 128)
        fc_w = w_ref[ROW_FC:ROW_FC + C3, 0:FC_OUTPUT]        # (48, 32)
        fc_b = w_ref[ROW_BFC:ROW_BFC + 1, 0:FC_OUTPUT]
        h = jnp.maximum(jnp.dot(feat, fc_w, preferred_element_type=jnp.float32) + fc_b, 0.0)
        out_w = w_ref[ROW_OUT:ROW_OUT + FC_OUTPUT, :]        # (32, 128), cols >= N_LABELS zero
        out_b = w_ref[ROW_BOUT:ROW_BOUT + 1, :]
        logits = jnp.dot(h, out_w, preferred_element_type=jnp.float32) + out_b  # (TB, 128)
        o_ref[...] = 1.0 / (1.0 + jnp.exp(-logits))          # sigmoid

    return kernel


def _pack_params(params):
    """Pack (embedding @ conv), FC and output weights/biases plus the static
    pooling mask into one lane-dense f32 slab (one DMA; VMEM-resident)."""
    emb, conv_ws, conv_bs, fc_w, fc_b, out_w, out_b = params

    # three Conv1d weights fused into one (4*E, 3*C) matrix (zero-padded taps)
    w_cat = jnp.zeros((KE, C3), jnp.float32)
    for i, (f, w) in enumerate(zip(FILTERS_LENGTH, conv_ws)):
        for k in range(f):                                   # w: (C, E, f)
            w_cat = w_cat.at[k * EMBEDDINGS_SIZE:(k + 1) * EMBEDDINGS_SIZE,
                             i * FILTERS_COUNT:(i + 1) * FILTERS_COUNT].set(w[:, :, k].T)
    # fold the embedding in offline: per-tap (V, C3) block = emb @ w_cat[tap k]
    w_fused = jnp.concatenate(
        [emb @ w_cat[k * EMBEDDINGS_SIZE:(k + 1) * EMBEDDINGS_SIZE, :]
         for k in range(MAX_F)], axis=0)                     # (4*V, C3)

    # static additive valid-window mask: 0 where t <= L - f, else -1e30
    t = jnp.arange(T_POS, dtype=jnp.int32)[:, None]
    g = jnp.arange(C3, dtype=jnp.int32)[None, :] // FILTERS_COUNT
    f_len = jnp.asarray(FILTERS_LENGTH, jnp.int32)[g]
    mask = jnp.where(t <= SEQ_LEN - f_len, 0.0, -1e30).astype(jnp.float32)

    p = jnp.zeros((PACK_ROWS, LANES), jnp.float32)
    p = p.at[ROW_W:ROW_W + KV, 0:C3].set(w_fused)
    p = p.at[ROW_FC:ROW_FC + C3, 0:FC_OUTPUT].set(fc_w.T)
    p = p.at[ROW_OUT:ROW_OUT + FC_OUTPUT, 0:N_LABELS].set(out_w.T)
    p = p.at[ROW_MASK:ROW_MASK + T_POS, 0:C3].set(mask)
    p = p.at[ROW_BCONV, 0:C3].set(jnp.concatenate(conv_bs))
    p = p.at[ROW_BFC, 0:FC_OUTPUT].set(fc_b)
    p = p.at[ROW_BOUT, 0:N_LABELS].set(out_b)
    return p


def _choose_batch_tile(b):
    """Largest sublane-aligned batch tile (<=128) that still leaves >= 2 grid
    steps when the batch allows it (v7x TensorCore split / MXU fill balance)."""
    b8 = _round_up(max(b, 1), 8)
    tile = 8
    for cand in (16, 32, 64, 128):
        if b8 % cand == 0 and b8 // cand >= 2:
            tile = cand
    return tile


def _prep_tokens(tokens, batch_tile):
    """Pad batch to the tile, build the 4-tap windowed token view offset into
    per-tap vocab blocks, and pack the 4 ids (< 256 each) into one int32."""
    b, l = tokens.shape
    assert l == SEQ_LEN
    b_pad = _round_up(max(b, 1), batch_tile)
    l_pad = T_POS + MAX_F - 1
    tok = jnp.zeros((b_pad, l_pad), jnp.int32)               # index 0 = padding token
    tok = tok.at[:b, :l].set(tokens.astype(jnp.int32))
    win = jnp.stack([tok[:, k:k + T_POS] for k in range(MAX_F)], axis=-1)  # (b_pad, T_POS, 4)
    win = win + jnp.arange(MAX_F, dtype=jnp.int32) * VOCAB_SIZE            # tap offsets, < 256
    packed = (win[..., 0] | (win[..., 1] << 8) | (win[..., 2] << 16) | (win[..., 3] << 24))
    return packed.reshape(b_pad * T_POS, 1), b_pad


@jax.jit
def cnn_classifier_forward(tokens, params):
    """Fused CNNClassifier forward pass: one pallas_call over batch tiles."""
    b = tokens.shape[0]
    batch_tile = _choose_batch_tile(b)
    tok_packed, b_pad = _prep_tokens(tokens, batch_tile)
    w_packed = _pack_params(params)
    n_tiles = b_pad // batch_tile
    out = pl.pallas_call(
        _make_kernel(batch_tile),
        out_shape=jax.ShapeDtypeStruct((b_pad, LANES), jnp.float32),
        grid=(n_tiles,),
        in_specs=[
            pl.BlockSpec((batch_tile * T_POS, 1), lambda i: (i, 0)),
            pl.BlockSpec((PACK_ROWS, LANES), lambda i: (0, 0)),  # constant -> resident weights
        ],
        out_specs=pl.BlockSpec((batch_tile, LANES), lambda i: (i, 0)),
        compiler_params=pltpu.CompilerParams(
            dimension_semantics=("parallel",)),
    )(tok_packed, w_packed)
    return out[:b, :N_LABELS]


def _reference_forward(tokens, params):
    """Pure-JAX reference (same math as the PyTorch module)."""
    (emb, conv_ws, conv_bs, fc_w, fc_b, out_w, out_b) = params
    x = jnp.take(emb, tokens, axis=0)                        # (B, L, E)
    pooled = []
    for w, b in zip(conv_ws, conv_bs):
        C, E, f = w.shape
        L_out = x.shape[1] - f + 1
        acc = jnp.broadcast_to(b.reshape(1, 1, C), (x.shape[0], L_out, C))
        for k in range(f):
            acc = acc + jnp.einsum('ble,ce->blc', x[:, k:k + L_out, :], w[:, :, k])
        pooled.append(jax.nn.relu(jnp.max(acc, axis=1)))
    feat = jnp.concatenate(pooled, axis=1)
    h = jax.nn.relu(feat @ fc_w.T + fc_b)
    return jax.nn.sigmoid(h @ out_w.T + out_b)


def init_params(key):
    ks = jax.random.split(key, 12)
    emb = jax.random.normal(ks[0], (VOCAB_SIZE, EMBEDDINGS_SIZE), jnp.float32)
    emb = emb.at[0].set(0.0)                                 # padding_idx=0
    conv_ws, conv_bs = [], []
    for i, f in enumerate(FILTERS_LENGTH):
        conv_ws.append(0.1 * jax.random.normal(
            ks[1 + i], (FILTERS_COUNT, EMBEDDINGS_SIZE, f), jnp.float32))
        conv_bs.append(0.1 * jax.random.normal(
            ks[4 + i], (FILTERS_COUNT,), jnp.float32))
    fc_w = 0.1 * jax.random.normal(
        ks[7], (FC_OUTPUT, FILTERS_COUNT * len(FILTERS_LENGTH)), jnp.float32)
    fc_b = 0.1 * jax.random.normal(ks[8], (FC_OUTPUT,), jnp.float32)
    out_w = 0.1 * jax.random.normal(ks[9], (N_LABELS, FC_OUTPUT), jnp.float32)
    out_b = 0.1 * jax.random.normal(ks[10], (N_LABELS,), jnp.float32)
    return (emb, conv_ws, conv_bs, fc_w, fc_b, out_w, out_b)


if __name__ == "__main__":
    key = jax.random.PRNGKey(0)
    params = init_params(key)
    tokens = jax.random.randint(jax.random.PRNGKey(1), (BATCH, SEQ_LEN),
                                minval=0, maxval=VOCAB_SIZE, dtype=jnp.int32)

    out = cnn_classifier_forward(tokens, params)
    out = jax.block_until_ready(out)

    ref = _reference_forward(tokens, params)
    assert out.shape == (BATCH, N_LABELS)
    np.testing.assert_allclose(np.asarray(out), np.asarray(ref), rtol=1e-5, atol=1e-5)
    print("KERNEL_OK")
</pallas_src>

<mosaic_0001>
module attributes {stable_mosaic.version = 11 : i64} {
  func.func @kernel(%arg0: i32, %arg1: memref<128x1xi32, #tpu.memory_space<vmem>>, %arg2: memref<376x128xf32, #tpu.memory_space<vmem>>, %arg3: memref<8x128xf32, #tpu.memory_space<vmem>>) attributes {dimension_semantics = [#tpu.dimension_semantics<parallel>], iteration_bounds = array<i64: 1>, scalar_prefetch = 0 : i64, scratch_operands = 0 : i64, tpu.core_type = #tpu.core_type<tc>, window_params = [{transform_indices = @transform_0, window_bounds = array<i64: 128, 1>}, {pipeline_mode = #tpu.pipeline_mode<synchronous>, transform_indices = @transform_1, window_bounds = array<i64: 376, 128>}, {transform_indices = @transform_2, window_bounds = array<i64: 8, 128>}]} {
    %c0 = arith.constant 0 : index
    %c0_0 = arith.constant 0 : index
    %0 = vector.load %arg1[%c0, %c0_0] : memref<128x1xi32, #tpu.memory_space<vmem>>, vector<128x1xi32>
    %1 = tpu.iota {dimensions = array<i32: 1>} : vector<128x256xi32>
    %c255_i32 = arith.constant 255 : i32
    %2 = vector.broadcast %c255_i32 : i32 to vector<128x1xi32>
    %3 = arith.andi %0, %2 : vector<128x1xi32>
    %4 = vector.broadcast %3 : vector<128x1xi32> to vector<128x256xi32>
    %5 = arith.cmpi eq, %1, %4 : vector<128x256xi32>
    %c8_i32 = arith.constant 8 : i32
    %6 = vector.broadcast %c8_i32 : i32 to vector<128x1xi32>
    %7 = arith.shrsi %0, %6 : vector<128x1xi32>
    %c255_i32_1 = arith.constant 255 : i32
    %8 = vector.broadcast %c255_i32_1 : i32 to vector<128x1xi32>
    %9 = arith.andi %7, %8 : vector<128x1xi32>
    %10 = vector.broadcast %9 : vector<128x1xi32> to vector<128x256xi32>
    %11 = arith.cmpi eq, %1, %10 : vector<128x256xi32>
    %12 = arith.ori %5, %11 : vector<128x256xi1>
    %c16_i32 = arith.constant 16 : i32
    %13 = vector.broadcast %c16_i32 : i32 to vector<128x1xi32>
    %14 = arith.shrsi %0, %13 : vector<128x1xi32>
    %c255_i32_2 = arith.constant 255 : i32
    %15 = vector.broadcast %c255_i32_2 : i32 to vector<128x1xi32>
    %16 = arith.andi %14, %15 : vector<128x1xi32>
    %17 = vector.broadcast %16 : vector<128x1xi32> to vector<128x256xi32>
    %18 = arith.cmpi eq, %1, %17 : vector<128x256xi32>
    %19 = arith.ori %12, %18 : vector<128x256xi1>
    %c24_i32 = arith.constant 24 : i32
    %20 = vector.broadcast %c24_i32 : i32 to vector<128x1xi32>
    %21 = arith.shrsi %0, %20 : vector<128x1xi32>
    %c255_i32_3 = arith.constant 255 : i32
    %22 = vector.broadcast %c255_i32_3 : i32 to vector<128x1xi32>
    %23 = arith.andi %21, %22 : vector<128x1xi32>
    %24 = vector.broadcast %23 : vector<128x1xi32> to vector<128x256xi32>
    %25 = arith.cmpi eq, %1, %24 : vector<128x256xi32>
    %26 = arith.ori %19, %25 : vector<128x256xi1>
    %27 = arith.extui %26 : vector<128x256xi1> to vector<128x256xi32>
    %28 = arith.sitofp %27 : vector<128x256xi32> to vector<128x256xf32>
    %c0_4 = arith.constant 0 : index
    %c0_5 = arith.constant 0 : index
    %29 = vector.load %arg2[%c0_4, %c0_5] : memref<376x128xf32, #tpu.memory_space<vmem>>, vector<256x48xf32>
    %cst = arith.constant dense<0.000000e+00> : vector<128x48xf32>
    %30 = tpu.matmul %28, %29, %cst {dimension_numbers = #tpu.dot_dimension_numbers<[1], [0], [0], [1], [0, 0, 1, 1], [], []>} : vector<128x256xf32>, vector<256x48xf32>, vector<128x48xf32> -> vector<128x48xf32>
    %c352 = arith.constant 352 : index
    %c0_6 = arith.constant 0 : index
    %31 = vector.load %arg2[%c352, %c0_6] : memref<376x128xf32, #tpu.memory_space<vmem>>, vector<1x48xf32>
    %32 = vector.broadcast %31 : vector<1x48xf32> to vector<128x48xf32>
    %33 = arith.addf %30, %32 : vector<128x48xf32>
    %c336 = arith.constant 336 : index
    %c0_7 = arith.constant 0 : index
    %34 = vector.load %arg2[%c336, %c0_7] : memref<376x128xf32, #tpu.memory_space<vmem>>, vector<16x48xf32>
    %35 = vector.shape_cast %33 : vector<128x48xf32> to vector<8x16x48xf32>
    %36 = vector.shape_cast %34 : vector<16x48xf32> to vector<1x16x48xf32>
    %37 = vector.broadcast %36 : vector<1x16x48xf32> to vector<8x16x48xf32>
    %38 = arith.addf %35, %37 : vector<8x16x48xf32>
    %cst_8 = arith.constant dense<0xFF800000> : vector<8x48xf32>
    %39 = vector.multi_reduction <maximumf>, %38, %cst_8 [1] : vector<8x16x48xf32> to vector<8x48xf32>
    %cst_9 = arith.constant 0.000000e+00 : f32
    %40 = vector.broadcast %cst_9 : f32 to vector<8x48xf32>
    %41 = arith.maximumf %39, %40 : vector<8x48xf32>
    %c256 = arith.constant 256 : index
    %c0_10 = arith.constant 0 : index
    %42 = vector.load %arg2[%c256, %c0_10] : memref<376x128xf32, #tpu.memory_space<vmem>>, vector<48x32xf32>
    %c360 = arith.constant 360 : index
    %c0_11 = arith.constant 0 : index
    %43 = vector.load %arg2[%c360, %c0_11] : memref<376x128xf32, #tpu.memory_space<vmem>>, vector<1x32xf32>
    %cst_12 = arith.constant dense<0.000000e+00> : vector<8x32xf32>
    %44 = tpu.matmul %41, %42, %cst_12 {dimension_numbers = #tpu.dot_dimension_numbers<[1], [0], [0], [1], [0, 0, 1, 1], [], []>} : vector<8x48xf32>, vector<48x32xf32>, vector<8x32xf32> -> vector<8x32xf32>
    %45 = vector.broadcast %43 : vector<1x32xf32> to vector<8x32xf32>
    %46 = arith.addf %44, %45 : vector<8x32xf32>
    %cst_13 = arith.constant 0.000000e+00 : f32
    %47 = vector.broadcast %cst_13 : f32 to vector<8x32xf32>
    %48 = arith.maximumf %46, %47 : vector<8x32xf32>
    %c304 = arith.constant 304 : index
    %c0_14 = arith.constant 0 : index
    %49 = vector.load %arg2[%c304, %c0_14] : memref<376x128xf32, #tpu.memory_space<vmem>>, vector<32x128xf32>
    %c368 = arith.constant 368 : index
    %c0_15 = arith.constant 0 : index
    %50 = vector.load %arg2[%c368, %c0_15] : memref<376x128xf32, #tpu.memory_space<vmem>>, vector<1x128xf32>
    %cst_16 = arith.constant dense<0.000000e+00> : vector<8x128xf32>
    %51 = tpu.matmul %48, %49, %cst_16 {dimension_numbers = #tpu.dot_dimension_numbers<[1], [0], [0], [1], [0, 0, 1, 1], [], []>} : vector<8x32xf32>, vector<32x128xf32>, vector<8x128xf32> -> vector<8x128xf32>
    %52 = vector.broadcast %50 : vector<1x128xf32> to vector<8x128xf32>
    %53 = arith.addf %51, %52 : vector<8x128xf32>
    %cst_17 = arith.constant 0.000000e+00 : f32
    %54 = vector.broadcast %cst_17 : f32 to vector<8x128xf32>
    %55 = arith.subf %54, %53 : vector<8x128xf32>
    %56 = math.exp %55 : vector<8x128xf32>
    %cst_18 = arith.constant 1.000000e+00 : f32
    %57 = vector.broadcast %cst_18 : f32 to vector<8x128xf32>
    %58 = arith.addf %57, %56 : vector<8x128xf32>
    %cst_19 = arith.constant 1.000000e+00 : f32
    %59 = vector.broadcast %cst_19 : f32 to vector<8x128xf32>
    %60 = arith.divf %59, %58 : vector<8x128xf32>
    %c0_20 = arith.constant 0 : index
    %c0_21 = arith.constant 0 : index
    %61 = vector.load %arg3[%c0_20, %c0_21] : memref<8x128xf32, #tpu.memory_space<vmem>>, vector<8x128xf32>
    tpu.vector_store %arg3[%c0_20, %c0_21], %60 {strides = array<i32>} : memref<8x128xf32, #tpu.memory_space<vmem>>, vector<8x128xf32>,
    return
  }
  func.func @transform_0(%arg0: i32) -> (i32, i32) {
    %c0_i32 = arith.constant 0 : i32
    %c0_i32_0 = arith.constant 0 : i32
    return %arg0, %c0_i32 : i32, i32
  }
  func.func @transform_1(%arg0: i32) -> (i32, i32) {
    %c0_i32 = arith.constant 0 : i32
    %c0_i32_0 = arith.constant 0 : i32
    %c0_i32_1 = arith.constant 0 : i32
    return %c0_i32, %c0_i32_0 : i32, i32
  }
  func.func @transform_2(%arg0: i32) -> (i32, i32) {
    %c0_i32 = arith.constant 0 : i32
    %c0_i32_0 = arith.constant 0 : i32
    return %arg0, %c0_i32 : i32, i32
  }
}

</mosaic_0001>

<llo_original>
// kernel: cnn_classifier_forward.1
$region0: #{cnn_classifier_forward.1}
  #allocation0 [shape = 'u32[]', space=smem, size = 0x4, offset = 0x4, fixed_abs, tag = 'smem constant byte address 0x4 - core index']
  #allocation1 [shape = 'u32[72,128]{1,0:T(1,128)}', space=vmem, size = 0x9000, scoped, tag = 'internal scratch']
  %s0 = inlined_call_operand.vmem [shape: s32[128,1], index: 0, kind: input, shape index: {}]
  %s1 = inlined_call_operand.vmem [shape: f32[376,128], index: 1, kind: input, shape index: {}]
  %s2 = inlined_call_operand.vmem [shape: f32[8,128], index: 2, kind: output, shape index: {}]
  %s3 = sld [smem:[#allocation0]]
  $region18: #{cnn_classifier_forward.1} parent=0
    _
  %s5 = ssub.s32 1, %s3
  %s6 = scalar_select 0, %s5, %s3
  // Predicated region
  $region2: #{cnn_classifier_forward.1} parent=0 // pred_check
    _
  $region3: #{cnn_classifier_forward.1} parent=0 // pred_check_branch
    %8 = sbr.rel (0) target = $region5
  $region4: #{cnn_classifier_forward.1} parent=0 // pred_region
    _
  $region5: #{cnn_classifier_forward.1} parent=0 // pred_fallthru
    _
  // Predicated region
  $region6: #{cnn_classifier_forward.1} parent=0 // pred_check
    _
  $region7: #{cnn_classifier_forward.1} parent=0 // pred_check_branch
    %10 = sbr.rel (0) target = $region9
  $region8: #{cnn_classifier_forward.1} parent=0 // pred_region
    _
  $region9: #{cnn_classifier_forward.1} parent=0 // pred_fallthru
    _
  %v11 = vld [vmem:[%s0] sm:$0xff]
  %v12 = vld [vmem:[%s0 + $0x8] sm:$0xff]
  %v13 = vld [vmem:[%s0 + $0x10] sm:$0xff]
  %v14 = vld [vmem:[%s0 + $0x18] sm:$0xff]
  %v15 = vld [vmem:[%s0 + $0x20] sm:$0xff]
  %v16 = vld [vmem:[%s0 + $0x28] sm:$0xff]
  %v17 = vld [vmem:[%s0 + $0x30] sm:$0xff]
  %v18 = vld [vmem:[%s0 + $0x38] sm:$0xff]
  %v19 = vld [vmem:[%s0 + $0x40] sm:$0xff]
  %v20 = vld [vmem:[%s0 + $0x48] sm:$0xff]
  %v21 = vld [vmem:[%s0 + $0x50] sm:$0xff]
  %v22 = vld [vmem:[%s0 + $0x58] sm:$0xff]
  %v23 = vld [vmem:[%s0 + $0x60] sm:$0xff]
  %v24 = vld [vmem:[%s0 + $0x68] sm:$0xff]
  %v25 = vld [vmem:[%s0 + $0x70] sm:$0xff]
  %v26 = vld [vmem:[%s0 + $0x78] sm:$0xff]
  %v27 = vlaneseq
  %v28 = vand.u32 %v27, 127
  %v29 = vadd.s32 %v28, 128
  %v30 = vand.u32 %v11, 255
  %v31 = vand.u32 %v12, 255
  %v32 = vand.u32 %v13, 255
  %v33 = vand.u32 %v14, 255
  %v34 = vand.u32 %v15, 255
  %v35 = vand.u32 %v16, 255
  %v36 = vand.u32 %v17, 255
  %v37 = vand.u32 %v18, 255
  %v38 = vand.u32 %v19, 255
  %v39 = vand.u32 %v20, 255
  %v40 = vand.u32 %v21, 255
  %v41 = vand.u32 %v22, 255
  %v42 = vand.u32 %v23, 255
  %v43 = vand.u32 %v24, 255
  %v44 = vand.u32 %v25, 255
  %v45 = vand.u32 %v26, 255
  %46 = vset.pattern.permute.xlu0 0
  %47 = vperm.xlu0 %46, %v30
  %v48 = vpop.permute.xlu0 %47
  %49 = vset.pattern.permute.xlu0 0
  %50 = vperm.xlu0 %49, %v31
  %v51 = vpop.permute.xlu0 %50
  %52 = vset.pattern.permute.xlu0 0
  %53 = vperm.xlu0 %52, %v32
  %v54 = vpop.permute.xlu0 %53
  %55 = vset.pattern.permute.xlu0 0
  %56 = vperm.xlu0 %55, %v33
  %v57 = vpop.permute.xlu0 %56
  %58 = vset.pattern.permute.xlu0 0
  %59 = vperm.xlu0 %58, %v34
  %v60 = vpop.permute.xlu0 %59
  %61 = vset.pattern.permute.xlu0 0
  %62 = vperm.xlu0 %61, %v35
  %v63 = vpop.permute.xlu0 %62
  %64 = vset.pattern.permute.xlu0 0
  %65 = vperm.xlu0 %64, %v36
  %v66 = vpop.permute.xlu0 %65
  %67 = vset.pattern.permute.xlu0 0
  %68 = vperm.xlu0 %67, %v37
  %v69 = vpop.permute.xlu0 %68
  %70 = vset.pattern.permute.xlu0 0
  %71 = vperm.xlu0 %70, %v38
  %v72 = vpop.permute.xlu0 %71
  %73 = vset.pattern.permute.xlu0 0
  %74 = vperm.xlu0 %73, %v39
  %v75 = vpop.permute.xlu0 %74
  %76 = vset.pattern.permute.xlu0 0
  %77 = vperm.xlu0 %76, %v40
  %v78 = vpop.permute.xlu0 %77
  %79 = vset.pattern.permute.xlu0 0
  %80 = vperm.xlu0 %79, %v41
  %v81 = vpop.permute.xlu0 %80
  %82 = vset.pattern.permute.xlu0 0
  %83 = vperm.xlu0 %82, %v42
  %v84 = vpop.permute.xlu0 %83
  %85 = vset.pattern.permute.xlu0 0
  %86 = vperm.xlu0 %85, %v43
  %v87 = vpop.permute.xlu0 %86
  %88 = vset.pattern.permute.xlu0 0
  %89 = vperm.xlu0 %88, %v44
  %v90 = vpop.permute.xlu0 %89
  %91 = vset.pattern.permute.xlu0 0
  %92 = vperm.xlu0 %91, %v45
  %v93 = vpop.permute.xlu0 %92
  %vm94 = vcmp.eq.s32.totalorder %v28, %v48
  %vm95 = vcmp.eq.s32.totalorder %v29, %v48
  %vm96 = vcmp.eq.s32.totalorder %v28, %v51
  %vm97 = vcmp.eq.s32.totalorder %v29, %v51
  %vm98 = vcmp.eq.s32.totalorder %v28, %v54
  %vm99 = vcmp.eq.s32.totalorder %v29, %v54
  %vm100 = vcmp.eq.s32.totalorder %v28, %v57
  %vm101 = vcmp.eq.s32.totalorder %v29, %v57
  %vm102 = vcmp.eq.s32.totalorder %v28, %v60
  %vm103 = vcmp.eq.s32.totalorder %v29, %v60
  %vm104 = vcmp.eq.s32.totalorder %v28, %v63
  %vm105 = vcmp.eq.s32.totalorder %v29, %v63
  %vm106 = vcmp.eq.s32.totalorder %v28, %v66
  %vm107 = vcmp.eq.s32.totalorder %v29, %v66
  %vm108 = vcmp.eq.s32.totalorder %v28, %v69
  %vm109 = vcmp.eq.s32.totalorder %v29, %v69
  %vm110 = vcmp.eq.s32.totalorder %v28, %v72
  %vm111 = vcmp.eq.s32.totalorder %v29, %v72
  %vm112 = vcmp.eq.s32.totalorder %v28, %v75
  %vm113 = vcmp.eq.s32.totalorder %v29, %v75
  %vm114 = vcmp.eq.s32.totalorder %v28, %v78
  %vm115 = vcmp.eq.s32.totalorder %v29, %v78
  %vm116 = vcmp.eq.s32.totalorder %v28, %v81
  %vm117 = vcmp.eq.s32.totalorder %v29, %v81
  %vm118 = vcmp.eq.s32.totalorder %v28, %v84
  %vm119 = vcmp.eq.s32.totalorder %v29, %v84
  %vm120 = vcmp.eq.s32.totalorder %v28, %v87
  %vm121 = vcmp.eq.s32.totalorder %v29, %v87
  %vm122 = vcmp.eq.s32.totalorder %v28, %v90
  %vm123 = vcmp.eq.s32.totalorder %v29, %v90
  %vm124 = vcmp.eq.s32.totalorder %v28, %v93
  %vm125 = vcmp.eq.s32.totalorder %v29, %v93
  %v126 = vshra.s32 %v11, 8
  %v127 = vshra.s32 %v12, 8
  %v128 = vshra.s32 %v13, 8
  %v129 = vshra.s32 %v14, 8
  %v130 = vshra.s32 %v15, 8
  %v131 = vshra.s32 %v16, 8
  %v132 = vshra.s32 %v17, 8
  %v133 = vshra.s32 %v18, 8
  %v134 = vshra.s32 %v19, 8
  %v135 = vshra.s32 %v20, 8
  %v136 = vshra.s32 %v21, 8
  %v137 = vshra.s32 %v22, 8
  %v138 = vshra.s32 %v23, 8
  %v139 = vshra.s32 %v24, 8
  %v140 = vshra.s32 %v25, 8
  %v141 = vshra.s32 %v26, 8
  %v142 = vand.u32 %v126, 255
  %v143 = vand.u32 %v127, 255
  %v144 = vand.u32 %v128, 255
  %v145 = vand.u32 %v129, 255
  %v146 = vand.u32 %v130, 255
  %v147 = vand.u32 %v131, 255
  %v148 = vand.u32 %v132, 255
  %v149 = vand.u32 %v133, 255
  %v150 = vand.u32 %v134, 255
  %v151 = vand.u32 %v135, 255
  %v152 = vand.u32 %v136, 255
  %v153 = vand.u32 %v137, 255
  %v154 = vand.u32 %v138, 255
  %v155 = vand.u32 %v139, 255
  %v156 = vand.u32 %v140, 255
  %v157 = vand.u32 %v141, 255
  %158 = vset.pattern.permute.xlu0 0
  %159 = vperm.xlu0 %158, %v142
  %v160 = vpop.permute.xlu0 %159
  %161 = vset.pattern.permute.xlu0 0
  %162 = vperm.xlu0 %161, %v143
  %v163 = vpop.permute.xlu0 %162
  %164 = vset.pattern.permute.xlu0 0
  %165 = vperm.xlu0 %164, %v144
  %v166 = vpop.permute.xlu0 %165
  %167 = vset.pattern.permute.xlu0 0
  %168 = vperm.xlu0 %167, %v145
  %v169 = vpop.permute.xlu0 %168
  %170 = vset.pattern.permute.xlu0 0
  %171 = vperm.xlu0 %170, %v146
  %v172 = vpop.permute.xlu0 %171
  %173 = vset.pattern.permute.xlu0 0
  %174 = vperm.xlu0 %173, %v147
  %v175 = vpop.permute.xlu0 %174
  %176 = vset.pattern.permute.xlu0 0
  %177 = vperm.xlu0 %176, %v148
  %v178 = vpop.permute.xlu0 %177
  %179 = vset.pattern.permute.xlu0 0
  %180 = vperm.xlu0 %179, %v149
  %v181 = vpop.permute.xlu0 %180
  %182 = vset.pattern.permute.xlu0 0
  %183 = vperm.xlu0 %182, %v150
  %v184 = vpop.permute.xlu0 %183
  %185 = vset.pattern.permute.xlu0 0
  %186 = vperm.xlu0 %185, %v151
  %v187 = vpop.permute.xlu0 %186
  %188 = vset.pattern.permute.xlu0 0
  %189 = vperm.xlu0 %188, %v152
  %v190 = vpop.permute.xlu0 %189
  %191 = vset.pattern.permute.xlu0 0
  %192 = vperm.xlu0 %191, %v153
  %v193 = vpop.permute.xlu0 %192
  %194 = vset.pattern.permute.xlu0 0
  %195 = vperm.xlu0 %194, %v154
  %v196 = vpop.permute.xlu0 %195
  %197 = vset.pattern.permute.xlu0 0
  %198 = vperm.xlu0 %197, %v155
  %v199 = vpop.permute.xlu0 %198
  %200 = vset.pattern.permute.xlu0 0
  %201 = vperm.xlu0 %200, %v156
  %v202 = vpop.permute.xlu0 %201
  %203 = vset.pattern.permute.xlu0 0
  %204 = vperm.xlu0 %203, %v157
  %v205 = vpop.permute.xlu0 %204
  %vm206 = vcmp.eq.s32.totalorder %v28, %v160
  %vm207 = vcmp.eq.s32.totalorder %v29, %v160
  %vm208 = vcmp.eq.s32.totalorder %v28, %v163
  %vm209 = vcmp.eq.s32.totalorder %v29, %v163
  %vm210 = vcmp.eq.s32.totalorder %v28, %v166
  %vm211 = vcmp.eq.s32.totalorder %v29, %v166
  %vm212 = vcmp.eq.s32.totalorder %v28, %v169
  %vm213 = vcmp.eq.s32.totalorder %v29, %v169
  %vm214 = vcmp.eq.s32.totalorder %v28, %v172
  %vm215 = vcmp.eq.s32.totalorder %v29, %v172
  %vm216 = vcmp.eq.s32.totalorder %v28, %v175
  %vm217 = vcmp.eq.s32.totalorder %v29, %v175
  %vm218 = vcmp.eq.s32.totalorder %v28, %v178
  %vm219 = vcmp.eq.s32.totalorder %v29, %v178
  %vm220 = vcmp.eq.s32.totalorder %v28, %v181
  %vm221 = vcmp.eq.s32.totalorder %v29, %v181
  %vm222 = vcmp.eq.s32.totalorder %v28, %v184
  %vm223 = vcmp.eq.s32.totalorder %v29, %v184
  %vm224 = vcmp.eq.s32.totalorder %v28, %v187
  %vm225 = vcmp.eq.s32.totalorder %v29, %v187
  %vm226 = vcmp.eq.s32.totalorder %v28, %v190
  %vm227 = vcmp.eq.s32.totalorder %v29, %v190
  %vm228 = vcmp.eq.s32.totalorder %v28, %v193
  %vm229 = vcmp.eq.s32.totalorder %v29, %v193
  %vm230 = vcmp.eq.s32.totalorder %v28, %v196
  %vm231 = vcmp.eq.s32.totalorder %v29, %v196
  %vm232 = vcmp.eq.s32.totalorder %v28, %v199
  %vm233 = vcmp.eq.s32.totalorder %v29, %v199
  %vm234 = vcmp.eq.s32.totalorder %v28, %v202
  %vm235 = vcmp.eq.s32.totalorder %v29, %v202
  %vm236 = vcmp.eq.s32.totalorder %v28, %v205
  %vm237 = vcmp.eq.s32.totalorder %v29, %v205
  %vm238 = vmor %vm94, %vm206
  %vm239 = vmor %vm95, %vm207
  %vm240 = vmor %vm96, %vm208
  %vm241 = vmor %vm97, %vm209
  %vm242 = vmor %vm98, %vm210
  %vm243 = vmor %vm99, %vm211
  %vm244 = vmor %vm100, %vm212
  %vm245 = vmor %vm101, %vm213
  %vm246 = vmor %vm102, %vm214
  %vm247 = vmor %vm103, %vm215
  %vm248 = vmor %vm104, %vm216
  %vm249 = vmor %vm105, %vm217
  %vm250 = vmor %vm106, %vm218
  %vm251 = vmor %vm107, %vm219
  %vm252 = vmor %vm108, %vm220
  %vm253 = vmor %vm109, %vm221
  %vm254 = vmor %vm110, %vm222
  %vm255 = vmor %vm111, %vm223
  %vm256 = vmor %vm112, %vm224
  %vm257 = vmor %vm113, %vm225
  %vm258 = vmor %vm114, %vm226
  %vm259 = vmor %vm115, %vm227
  %vm260 = vmor %vm116, %vm228
  %vm261 = vmor %vm117, %vm229
  %vm262 = vmor %vm118, %vm230
  %vm263 = vmor %vm119, %vm231
  %vm264 = vmor %vm120, %vm232
  %vm265 = vmor %vm121, %vm233
  %vm266 = vmor %vm122, %vm234
  %vm267 = vmor %vm123, %vm235
  %vm268 = vmor %vm124, %vm236
  %vm269 = vmor %vm125, %vm237
  %v270 = vshra.s32 %v11, 16
  %v271 = vshra.s32 %v12, 16
  %v272 = vshra.s32 %v13, 16
  %v273 = vshra.s32 %v14, 16
  %v274 = vshra.s32 %v15, 16
  %v275 = vshra.s32 %v16, 16
  %v276 = vshra.s32 %v17, 16
  %v277 = vshra.s32 %v18, 16
  %v278 = vshra.s32 %v19, 16
  %v279 = vshra.s32 %v20, 16
  %v280 = vshra.s32 %v21, 16
  %v281 = vshra.s32 %v22, 16
  %v282 = vshra.s32 %v23, 16
  %v283 = vshra.s32 %v24, 16
  %v284 = vshra.s32 %v25, 16
  %v285 = vshra.s32 %v26, 16
  %v286 = vand.u32 %v270, 255
  %v287 = vand.u32 %v271, 255
  %v288 = vand.u32 %v272, 255
  %v289 = vand.u32 %v273, 255
  %v290 = vand.u32 %v274, 255
  %v291 = vand.u32 %v275, 255
  %v292 = vand.u32 %v276, 255
  %v293 = vand.u32 %v277, 255
  %v294 = vand.u32 %v278, 255
  %v295 = vand.u32 %v279, 255
  %v296 = vand.u32 %v280, 255
  %v297 = vand.u32 %v281, 255
  %v298 = vand.u32 %v282, 255
  %v299 = vand.u32 %v283, 255
  %v300 = vand.u32 %v284, 255
  %v301 = vand.u32 %v285, 255
  %302 = vset.pattern.permute.xlu0 0
  %303 = vperm.xlu0 %302, %v286
  %v304 = vpop.permute.xlu0 %303
  %305 = vset.pattern.permute.xlu0 0
  %306 = vperm.xlu0 %305, %v287
  %v307 = vpop.permute.xlu0 %306
  %308 = vset.pattern.permute.xlu0 0
  %309 = vperm.xlu0 %308, %v288
  %v310 = vpop.permute.xlu0 %309
  %311 = vset.pattern.permute.xlu0 0
  %312 = vperm.xlu0 %311, %v289
  %v313 = vpop.permute.xlu0 %312
  %314 = vset.pattern.permute.xlu0 0
  %315 = vperm.xlu0 %314, %v290
  %v316 = vpop.permute.xlu0 %315
  %317 = vset.pattern.permute.xlu0 0
  %318 = vperm.xlu0 %317, %v291
  %v319 = vpop.permute.xlu0 %318
  %320 = vset.pattern.permute.xlu0 0
  %321 = vperm.xlu0 %320, %v292
  %v322 = vpop.permute.xlu0 %321
  %323 = vset.pattern.permute.xlu0 0
  %324 = vperm.xlu0 %323, %v293
  %v325 = vpop.permute.xlu0 %324
  %326 = vset.pattern.permute.xlu0 0
  %327 = vperm.xlu0 %326, %v294
  %v328 = vpop.permute.xlu0 %327
  %329 = vset.pattern.permute.xlu0 0
  %330 = vperm.xlu0 %329, %v295
  %v331 = vpop.permute.xlu0 %330
  %332 = vset.pattern.permute.xlu0 0
  %333 = vperm.xlu0 %332, %v296
  %v334 = vpop.permute.xlu0 %333
  %335 = vset.pattern.permute.xlu0 0
  %336 = vperm.xlu0 %335, %v297
  %v337 = vpop.permute.xlu0 %336
  %338 = vset.pattern.permute.xlu0 0
  %339 = vperm.xlu0 %338, %v298
  %v340 = vpop.permute.xlu0 %339
  %341 = vset.pattern.permute.xlu0 0
  %342 = vperm.xlu0 %341, %v299
  %v343 = vpop.permute.xlu0 %342
  %344 = vset.pattern.permute.xlu0 0
  %345 = vperm.xlu0 %344, %v300
  %v346 = vpop.permute.xlu0 %345
  %347 = vset.pattern.permute.xlu0 0
  %348 = vperm.xlu0 %347, %v301
  %v349 = vpop.permute.xlu0 %348
  %vm350 = vcmp.eq.s32.totalorder %v28, %v304
  %vm351 = vcmp.eq.s32.totalorder %v29, %v304
  %vm352 = vcmp.eq.s32.totalorder %v28, %v307
  %vm353 = vcmp.eq.s32.totalorder %v29, %v307
  %vm354 = vcmp.eq.s32.totalorder %v28, %v310
  %vm355 = vcmp.eq.s32.totalorder %v29, %v310
  %vm356 = vcmp.eq.s32.totalorder %v28, %v313
  %vm357 = vcmp.eq.s32.totalorder %v29, %v313
  %vm358 = vcmp.eq.s32.totalorder %v28, %v316
  %vm359 = vcmp.eq.s32.totalorder %v29, %v316
  %vm360 = vcmp.eq.s32.totalorder %v28, %v319
  %vm361 = vcmp.eq.s32.totalorder %v29, %v319
  %vm362 = vcmp.eq.s32.totalorder %v28, %v322
  %vm363 = vcmp.eq.s32.totalorder %v29, %v322
  %vm364 = vcmp.eq.s32.totalorder %v28, %v325
  %vm365 = vcmp.eq.s32.totalorder %v29, %v325
  %vm366 = vcmp.eq.s32.totalorder %v28, %v328
  %vm367 = vcmp.eq.s32.totalorder %v29, %v328
  %vm368 = vcmp.eq.s32.totalorder %v28, %v331
  %vm369 = vcmp.eq.s32.totalorder %v29, %v331
  %vm370 = vcmp.eq.s32.totalorder %v28, %v334
  %vm371 = vcmp.eq.s32.totalorder %v29, %v334
  %vm372 = vcmp.eq.s32.totalorder %v28, %v337
  %vm373 = vcmp.eq.s32.totalorder %v29, %v337
  %vm374 = vcmp.eq.s32.totalorder %v28, %v340
  %vm375 = vcmp.eq.s32.totalorder %v29, %v340
  %vm376 = vcmp.eq.s32.totalorder %v28, %v343
  %vm377 = vcmp.eq.s32.totalorder %v29, %v343
  %vm378 = vcmp.eq.s32.totalorder %v28, %v346
  %vm379 = vcmp.eq.s32.totalorder %v29, %v346
  %vm380 = vcmp.eq.s32.totalorder %v28, %v349
  %vm381 = vcmp.eq.s32.totalorder %v29, %v349
  %vm382 = vmor %vm238, %vm350
  %vm383 = vmor %vm239, %vm351
  %vm384 = vmor %vm240, %vm352
  %vm385 = vmor %vm241, %vm353
  %vm386 = vmor %vm242, %vm354
  %vm387 = vmor %vm243, %vm355
  %vm388 = vmor %vm244, %vm356
  %vm389 = vmor %vm245, %vm357
  %vm390 = vmor %vm246, %vm358
  %vm391 = vmor %vm247, %vm359
  %vm392 = vmor %vm248, %vm360
  %vm393 = vmor %vm249, %vm361
  %vm394 = vmor %vm250, %vm362
  %vm395 = vmor %vm251, %vm363
  %vm396 = vmor %vm252, %vm364
  %vm397 = vmor %vm253, %vm365
  %vm398 = vmor %vm254, %vm366
  %vm399 = vmor %vm255, %vm367
  %vm400 = vmor %vm256, %vm368
  %vm401 = vmor %vm257, %vm369
  %vm402 = vmor %vm258, %vm370
  %vm403 = vmor %vm259, %vm371
  %vm404 = vmor %vm260, %vm372
  %vm405 = vmor %vm261, %vm373
  %vm406 = vmor %vm262, %vm374
  %vm407 = vmor %vm263, %vm375
  %vm408 = vmor %vm264, %vm376
  %vm409 = vmor %vm265, %vm377
  %vm410 = vmor %vm266, %vm378
  %vm411 = vmor %vm267, %vm379
  %vm412 = vmor %vm268, %vm380
  %vm413 = vmor %vm269, %vm381
  %v414 = vshra.s32 %v11, 24
  %v415 = vshra.s32 %v12, 24
  %v416 = vshra.s32 %v13, 24
  %v417 = vshra.s32 %v14, 24
  %v418 = vshra.s32 %v15, 24
  %v419 = vshra.s32 %v16, 24
  %v420 = vshra.s32 %v17, 24
  %v421 = vshra.s32 %v18, 24
  %v422 = vshra.s32 %v19, 24
  %v423 = vshra.s32 %v20, 24
  %v424 = vshra.s32 %v21, 24
  %v425 = vshra.s32 %v22, 24
  %v426 = vshra.s32 %v23, 24
  %v427 = vshra.s32 %v24, 24
  %v428 = vshra.s32 %v25, 24
  %v429 = vshra.s32 %v26, 24
  %v430 = vand.u32 %v414, 255
  %v431 = vand.u32 %v415, 255
  %v432 = vand.u32 %v416, 255
  %v433 = vand.u32 %v417, 255
  %v434 = vand.u32 %v418, 255
  %v435 = vand.u32 %v419, 255
  %v436 = vand.u32 %v420, 255
  %v437 = vand.u32 %v421, 255
  %v438 = vand.u32 %v422, 255
  %v439 = vand.u32 %v423, 255
  %v440 = vand.u32 %v424, 255
  %v441 = vand.u32 %v425, 255
  %v442 = vand.u32 %v426, 255
  %v443 = vand.u32 %v427, 255
  %v444 = vand.u32 %v428, 255
  %v445 = vand.u32 %v429, 255
  %446 = vset.pattern.permute.xlu0 0
  %447 = vperm.xlu0 %446, %v430
  %v448 = vpop.permute.xlu0 %447
  %449 = vset.pattern.permute.xlu0 0
  %450 = vperm.xlu0 %449, %v431
  %v451 = vpop.permute.xlu0 %450
  %452 = vset.pattern.permute.xlu0 0
  %453 = vperm.xlu0 %452, %v432
  %v454 = vpop.permute.xlu0 %453
  %455 = vset.pattern.permute.xlu0 0
  %456 = vperm.xlu0 %455, %v433
  %v457 = vpop.permute.xlu0 %456
  %458 = vset.pattern.permute.xlu0 0
  %459 = vperm.xlu0 %458, %v434
  %v460 = vpop.permute.xlu0 %459
  %461 = vset.pattern.permute.xlu0 0
  %462 = vperm.xlu0 %461, %v435
  %v463 = vpop.permute.xlu0 %462
  %464 = vset.pattern.permute.xlu0 0
  %465 = vperm.xlu0 %464, %v436
  %v466 = vpop.permute.xlu0 %465
  %467 = vset.pattern.permute.xlu0 0
  %468 = vperm.xlu0 %467, %v437
  %v469 = vpop.permute.xlu0 %468
  %470 = vset.pattern.permute.xlu0 0
  %471 = vperm.xlu0 %470, %v438
  %v472 = vpop.permute.xlu0 %471
  %473 = vset.pattern.permute.xlu0 0
  %474 = vperm.xlu0 %473, %v439
  %v475 = vpop.permute.xlu0 %474
  %476 = vset.pattern.permute.xlu0 0
  %477 = vperm.xlu0 %476, %v440
  %v478 = vpop.permute.xlu0 %477
  %479 = vset.pattern.permute.xlu0 0
  %480 = vperm.xlu0 %479, %v441
  %v481 = vpop.permute.xlu0 %480
  %482 = vset.pattern.permute.xlu0 0
  %483 = vperm.xlu0 %482, %v442
  %v484 = vpop.permute.xlu0 %483
  %485 = vset.pattern.permute.xlu0 0
  %486 = vperm.xlu0 %485, %v443
  %v487 = vpop.permute.xlu0 %486
  %488 = vset.pattern.permute.xlu0 0
  %489 = vperm.xlu0 %488, %v444
  %v490 = vpop.permute.xlu0 %489
  %491 = vset.pattern.permute.xlu0 0
  %492 = vperm.xlu0 %491, %v445
  %v493 = vpop.permute.xlu0 %492
  %vm494 = vcmp.eq.s32.totalorder %v28, %v448
  %vm495 = vcmp.eq.s32.totalorder %v29, %v448
  %vm496 = vcmp.eq.s32.totalorder %v28, %v451
  %vm497 = vcmp.eq.s32.totalorder %v29, %v451
  %vm498 = vcmp.eq.s32.totalorder %v28, %v454
  %vm499 = vcmp.eq.s32.totalorder %v29, %v454
  %vm500 = vcmp.eq.s32.totalorder %v28, %v457
  %vm501 = vcmp.eq.s32.totalorder %v29, %v457
  %vm502 = vcmp.eq.s32.totalorder %v28, %v460
  %vm503 = vcmp.eq.s32.totalorder %v29, %v460
  %vm504 = vcmp.eq.s32.totalorder %v28, %v463
  %vm505 = vcmp.eq.s32.totalorder %v29, %v463
  %vm506 = vcmp.eq.s32.totalorder %v28, %v466
  %vm507 = vcmp.eq.s32.totalorder %v29, %v466
  %vm508 = vcmp.eq.s32.totalorder %v28, %v469
  %vm509 = vcmp.eq.s32.totalorder %v29, %v469
  %vm510 = vcmp.eq.s32.totalorder %v28, %v472
  %vm511 = vcmp.eq.s32.totalorder %v29, %v472
  %vm512 = vcmp.eq.s32.totalorder %v28, %v475
  %vm513 = vcmp.eq.s32.totalorder %v29, %v475
  %vm514 = vcmp.eq.s32.totalorder %v28, %v478
  %vm515 = vcmp.eq.s32.totalorder %v29, %v478
  %vm516 = vcmp.eq.s32.totalorder %v28, %v481
  %vm517 = vcmp.eq.s32.totalorder %v29, %v481
  %vm518 = vcmp.eq.s32.totalorder %v28, %v484
  %vm519 = vcmp.eq.s32.totalorder %v29, %v484
  %vm520 = vcmp.eq.s32.totalorder %v28, %v487
  %vm521 = vcmp.eq.s32.totalorder %v29, %v487
  %vm522 = vcmp.eq.s32.totalorder %v28, %v490
  %vm523 = vcmp.eq.s32.totalorder %v29, %v490
  %vm524 = vcmp.eq.s32.totalorder %v28, %v493
  %vm525 = vcmp.eq.s32.totalorder %v29, %v493
  %vm526 = vmor %vm382, %vm494
  %vm527 = vmor %vm383, %vm495
  %vm528 = vmor %vm384, %vm496
  %vm529 = vmor %vm385, %vm497
  %vm530 = vmor %vm386, %vm498
  %vm531 = vmor %vm387, %vm499
  %vm532 = vmor %vm388, %vm500
  %vm533 = vmor %vm389, %vm501
  %vm534 = vmor %vm390, %vm502
  %vm535 = vmor %vm391, %vm503
  %vm536 = vmor %vm392, %vm504
  %vm537 = vmor %vm393, %vm505
  %vm538 = vmor %vm394, %vm506
  %vm539 = vmor %vm395, %vm507
  %vm540 = vmor %vm396, %vm508
  %vm541 = vmor %vm397, %vm509
  %vm542 = vmor %vm398, %vm510
  %vm543 = vmor %vm399, %vm511
  %vm544 = vmor %vm400, %vm512
  %vm545 = vmor %vm401, %vm513
  %vm546 = vmor %vm402, %vm514
  %vm547 = vmor %vm403, %vm515
  %vm548 = vmor %vm404, %vm516
  %vm549 = vmor %vm405, %vm517
  %vm550 = vmor %vm406, %vm518
  %vm551 = vmor %vm407, %vm519
  %vm552 = vmor %vm408, %vm520
  %vm553 = vmor %vm409, %vm521
  %vm554 = vmor %vm410, %vm522
  %vm555 = vmor %vm411, %vm523
  %vm556 = vmor %vm412, %vm524
  %vm557 = vmor %vm413, %vm525
  %v558 = vsel %vm526, 1, 0
  %v559 = vsel %vm527, 1, 0
  %v560 = vsel %vm528, 1, 0
  %v561 = vsel %vm529, 1, 0
  %v562 = vsel %vm530, 1, 0
  %v563 = vsel %vm531, 1, 0
  %v564 = vsel %vm532, 1, 0
  %v565 = vsel %vm533, 1, 0
  %v566 = vsel %vm534, 1, 0
  %v567 = vsel %vm535, 1, 0
  %v568 = vsel %vm536, 1, 0
  %v569 = vsel %vm537, 1, 0
  %v570 = vsel %vm538, 1, 0
  %v571 = vsel %vm539, 1, 0
  %v572 = vsel %vm540, 1, 0
  %v573 = vsel %vm541, 1, 0
  %v574 = vsel %vm542, 1, 0
  %v575 = vsel %vm543, 1, 0
  %v576 = vsel %vm544, 1, 0
  %v577 = vsel %vm545, 1, 0
  %v578 = vsel %vm546, 1, 0
  %v579 = vsel %vm547, 1, 0
  %v580 = vsel %vm548, 1, 0
  %v581 = vsel %vm549, 1, 0
  %v582 = vsel %vm550, 1, 0
  %v583 = vsel %vm551, 1, 0
  %v584 = vsel %vm552, 1, 0
  %v585 = vsel %vm553, 1, 0
  %v586 = vsel %vm554, 1, 0
  %v587 = vsel %vm555, 1, 0
  %v588 = vsel %vm556, 1, 0
  %v589 = vsel %vm557, 1, 0
  %v590 = vcvt.s32.f32 %v558
  %v591 = vcvt.s32.f32 %v559
  %v592 = vcvt.s32.f32 %v560
  %v593 = vcvt.s32.f32 %v561
  %v594 = vcvt.s32.f32 %v562
  %v595 = vcvt.s32.f32 %v563
  %v596 = vcvt.s32.f32 %v564
  %v597 = vcvt.s32.f32 %v565
  %v598 = vcvt.s32.f32 %v566
  %v599 = vcvt.s32.f32 %v567
  %v600 = vcvt.s32.f32 %v568
  %v601 = vcvt.s32.f32 %v569
  %v602 = vcvt.s32.f32 %v570
  %v603 = vcvt.s32.f32 %v571
  %v604 = vcvt.s32.f32 %v572
  %v605 = vcvt.s32.f32 %v573
  %v606 = vcvt.s32.f32 %v574
  %v607 = vcvt.s32.f32 %v575
  %v608 = vcvt.s32.f32 %v576
  %v609 = vcvt.s32.f32 %v577
  %v610 = vcvt.s32.f32 %v578
  %v611 = vcvt.s32.f32 %v579
  %v612 = vcvt.s32.f32 %v580
  %v613 = vcvt.s32.f32 %v581
  %v614 = vcvt.s32.f32 %v582
  %v615 = vcvt.s32.f32 %v583
  %v616 = vcvt.s32.f32 %v584
  %v617 = vcvt.s32.f32 %v585
  %v618 = vcvt.s32.f32 %v586
  %v619 = vcvt.s32.f32 %v587
  %v620 = vcvt.s32.f32 %v588
  %v621 = vcvt.s32.f32 %v589
  %v622 = vld [vmem:[%s1] sm:$0xff]
  %v623 = vld [vmem:[%s1 + $0x8] sm:$0xff]
  %v624 = vld [vmem:[%s1 + $0x10] sm:$0xff]
  %v625 = vld [vmem:[%s1 + $0x18] sm:$0xff]
  %v626 = vld [vmem:[%s1 + $0x20] sm:$0xff]
  %v627 = vld [vmem:[%s1 + $0x28] sm:$0xff]
  %v628 = vld [vmem:[%s1 + $0x30] sm:$0xff]
  %v629 = vld [vmem:[%s1 + $0x38] sm:$0xff]
  %v630 = vld [vmem:[%s1 + $0x40] sm:$0xff]
  %v631 = vld [vmem:[%s1 + $0x48] sm:$0xff]
  %v632 = vld [vmem:[%s1 + $0x50] sm:$0xff]
  %v633 = vld [vmem:[%s1 + $0x58] sm:$0xff]
  %v634 = vld [vmem:[%s1 + $0x60] sm:$0xff]
  %v635 = vld [vmem:[%s1 + $0x68] sm:$0xff]
  %v636 = vld [vmem:[%s1 + $0x70] sm:$0xff]
  %v637 = vld [vmem:[%s1 + $0x78] sm:$0xff]
  %v638 = vld [vmem:[%s1 + $0x80] sm:$0xff]
  %v639 = vld [vmem:[%s1 + $0x88] sm:$0xff]
  %v640 = vld [vmem:[%s1 + $0x90] sm:$0xff]
  %v641 = vld [vmem:[%s1 + $0x98] sm:$0xff]
  %v642 = vld [vmem:[%s1 + $0xa0] sm:$0xff]
  %v643 = vld [vmem:[%s1 + $0xa8] sm:$0xff]
  %v644 = vld [vmem:[%s1 + $0xb0] sm:$0xff]
  %v645 = vld [vmem:[%s1 + $0xb8] sm:$0xff]
  %v646 = vld [vmem:[%s1 + $0xc0] sm:$0xff]
  %v647 = vld [vmem:[%s1 + $0xc8] sm:$0xff]
  %v648 = vld [vmem:[%s1 + $0xd0] sm:$0xff]
  %v649 = vld [vmem:[%s1 + $0xd8] sm:$0xff]
  %v650 = vld [vmem:[%s1 + $0xe0] sm:$0xff]
  %v651 = vld [vmem:[%s1 + $0xe8] sm:$0xff]
  %v652 = vld [vmem:[%s1 + $0xf0] sm:$0xff]
  %v653 = vld [vmem:[%s1 + $0xf8] sm:$0xff]
  %v654 = vld [vmem:[%s1 + $0x160] sm:$0x1]
  %v655 = vperm.slane %v654, 0
  %656 = vmatpush.msra.mxu0 %v637
  %657 = vmatpush.msra.mxu0 %v636
  %658 = vmatpush.msra.mxu0 %v635
  %659 = vmatpush.msra.mxu0 %v634
  %660 = vmatpush.msra.mxu0 %v633
  %661 = vmatpush.msra.mxu0 %v632
  %662 = vmatpush.msra.mxu0 %v631
  %663 = vmatpush.msra.mxu0 %v630
  %664 = vmatpush.msra.mxu0 %v629
  %665 = vmatpush.msra.mxu0 %v628
  %666 = vmatpush.msra.mxu0 %v627
  %667 = vmatpush.msra.mxu0 %v626
  %668 = vmatpush.msra.mxu0 %v625
  %669 = vmatpush.msra.mxu0 %v624
  %670 = vmatpush.msra.mxu0 %v623
  %671 = vmatpush.msra.mxu0 %v622
  %672 = vmatmul.f32.gmra.mxu0 %v590
  %v673 = vpop.f32.mrf.mxu0
  %v674 = vadd.f32 %v655, %v673
  %675 = vmatmul.f32.gmra.mxu0 %v592
  %v676 = vpop.f32.mrf.mxu0
  %v677 = vadd.f32 %v655, %v676
  %678 = vmatmul.f32.gmra.mxu0 %v594
  %v679 = vpop.f32.mrf.mxu0
  %v680 = vadd.f32 %v655, %v679
  %681 = vmatmul.f32.gmra.mxu0 %v596
  %v682 = vpop.f32.mrf.mxu0
  %v683 = vadd.f32 %v655, %v682
  %684 = vmatmul.f32.gmra.mxu0 %v598
  %v685 = vpop.f32.mrf.mxu0
  %v686 = vadd.f32 %v655, %v685
  %687 = vmatmul.f32.gmra.mxu0 %v600
  %v688 = vpop.f32.mrf.mxu0
  %v689 = vadd.f32 %v655, %v688
  %690 = vmatmul.f32.gmra.mxu0 %v602
  %v691 = vpop.f32.mrf.mxu0
  %v692 = vadd.f32 %v655, %v691
  %693 = vmatmul.f32.gmra.mxu0 %v604
  %v694 = vpop.f32.mrf.mxu0
  %v695 = vadd.f32 %v655, %v694
  %696 = vmatmul.f32.gmra.mxu0 %v606
  %v697 = vpop.f32.mrf.mxu0
  %v698 = vadd.f32 %v655, %v697
  %699 = vmatmul.f32.gmra.mxu0 %v608
  %v700 = vpop.f32.mrf.mxu0
  %v701 = vadd.f32 %v655, %v700
  %702 = vmatmul.f32.gmra.mxu0 %v610
  %v703 = vpop.f32.mrf.mxu0
  %v704 = vadd.f32 %v655, %v703
  %705 = vmatmul.f32.gmra.mxu0 %v612
  %v706 = vpop.f32.mrf.mxu0
  %v707 = vadd.f32 %v655, %v706
  %708 = vmatmul.f32.gmra.mxu0 %v614
  %v709 = vpop.f32.mrf.mxu0
  %v710 = vadd.f32 %v655, %v709
  %711 = vmatmul.f32.gmra.mxu0 %v616
  %v712 = vpop.f32.mrf.mxu0
  %v713 = vadd.f32 %v655, %v712
  %714 = vmatmul.f32.gmra.mxu0 %v618
  %v715 = vpop.f32.mrf.mxu0
  %v716 = vadd.f32 %v655, %v715
  %717 = vmatmul.f32.gmra.mxu0 %v620
  %v718 = vpop.f32.mrf.mxu0
  %v719 = vadd.f32 %v655, %v718
  %720 = vdwg.mxu0
  %721 = vmatpush.msra.mxu0 %v653
  %722 = vmatpush.msra.mxu0 %v652
  %723 = vmatpush.msra.mxu0 %v651
  %724 = vmatpush.msra.mxu0 %v650
  %725 = vmatpush.msra.mxu0 %v649
  %726 = vmatpush.msra.mxu0 %v648
  %727 = vmatpush.msra.mxu0 %v647
  %728 = vmatpush.msra.mxu0 %v646
  %729 = vmatpush.msra.mxu0 %v645
  %730 = vmatpush.msra.mxu0 %v644
  %731 = vmatpush.msra.mxu0 %v643
  %732 = vmatpush.msra.mxu0 %v642
  %733 = vmatpush.msra.mxu0 %v641
  %734 = vmatpush.msra.mxu0 %v640
  %735 = vmatpush.msra.mxu0 %v639
  %736 = vmatpush.msra.mxu0 %v638
  %737 = vmatmul.f32.gmra.mxu0 %v591
  %v738 = vpop.f32.mrf.mxu0
  %v739 = vadd.f32 %v674, %v738
  %740 = vmatmul.f32.gmra.mxu0 %v593
  %v741 = vpop.f32.mrf.mxu0
  %v742 = vadd.f32 %v677, %v741
  %743 = vmatmul.f32.gmra.mxu0 %v595
  %v744 = vpop.f32.mrf.mxu0
  %v745 = vadd.f32 %v680, %v744
  %746 = vmatmul.f32.gmra.mxu0 %v597
  %v747 = vpop.f32.mrf.mxu0
  %v748 = vadd.f32 %v683, %v747
  %749 = vmatmul.f32.gmra.mxu0 %v599
  %v750 = vpop.f32.mrf.mxu0
  %v751 = vadd.f32 %v686, %v750
  %752 = vmatmul.f32.gmra.mxu0 %v601
  %v753 = vpop.f32.mrf.mxu0
  %v754 = vadd.f32 %v689, %v753
  %755 = vmatmul.f32.gmra.mxu0 %v603
  %v756 = vpop.f32.mrf.mxu0
  %v757 = vadd.f32 %v692, %v756
  %758 = vmatmul.f32.gmra.mxu0 %v605
  %v759 = vpop.f32.mrf.mxu0
  %v760 = vadd.f32 %v695, %v759
  %761 = vmatmul.f32.gmra.mxu0 %v607
  %v762 = vpop.f32.mrf.mxu0
  %v763 = vadd.f32 %v698, %v762
  %764 = vmatmul.f32.gmra.mxu0 %v609
  %v765 = vpop.f32.mrf.mxu0
  %v766 = vadd.f32 %v701, %v765
  %767 = vmatmul.f32.gmra.mxu0 %v611
  %v768 = vpop.f32.mrf.mxu0
  %v769 = vadd.f32 %v704, %v768
  %770 = vmatmul.f32.gmra.mxu0 %v613
  %v771 = vpop.f32.mrf.mxu0
  %v772 = vadd.f32 %v707, %v771
  %773 = vmatmul.f32.gmra.mxu0 %v615
  %v774 = vpop.f32.mrf.mxu0
  %v775 = vadd.f32 %v710, %v774
  %776 = vmatmul.f32.gmra.mxu0 %v617
  %v777 = vpop.f32.mrf.mxu0
  %v778 = vadd.f32 %v713, %v777
  %779 = vmatmul.f32.gmra.mxu0 %v619
  %v780 = vpop.f32.mrf.mxu0
  %v781 = vadd.f32 %v716, %v780
  %782 = vmatmul.f32.gmra.mxu0 %v621
  %v783 = vpop.f32.mrf.mxu0
  %v784 = vadd.f32 %v719, %v783
  %785 = vdwg.mxu0
  %v786 = vld [vmem:[%s1 + $0x150] sm:$0xff]
  %v787 = vld [vmem:[%s1 + $0x158] sm:$0xff]
  %v788 = vadd.f32 %v739, %v786
  %v789 = vadd.f32 %v742, %v787
  %v790 = vadd.f32 %v745, %v786
  %v791 = vadd.f32 %v748, %v787
  %v792 = vadd.f32 %v751, %v786
  %v793 = vadd.f32 %v754, %v787
  %v794 = vadd.f32 %v757, %v786
  %v795 = vadd.f32 %v760, %v787
  %v796 = vadd.f32 %v763, %v786
  %v797 = vadd.f32 %v766, %v787
  %v798 = vadd.f32 %v769, %v786
  %v799 = vadd.f32 %v772, %v787
  %v800 = vadd.f32 %v775, %v786
  %v801 = vadd.f32 %v778, %v787
  %v802 = vadd.f32 %v781, %v786
  %v803 = vadd.f32 %v784, %v787
  %vm804 = vcmask 392192
  %v805 = vsel %vm804, %v788, -inf
  %v806 = vsel %vm804, %v789, -inf
  %v807 = vmax.f32 %v805, %v806
  %v808 = vrot.slane %v807, 4
  %v809 = vmax.f32 %v807, %v808
  %v810 = vrot.slane %v809, 2
  %v811 = vmax.f32 %v809, %v810
  %v812 = vrot.slane %v811, 1
  %v813 = vmax.f32 %v811, %v812
  %v814 = vsel %vm804, %v790, -inf
  %v815 = vsel %vm804, %v791, -inf
  %v816 = vmax.f32 %v814, %v815
  %v817 = vrot.slane %v816, 4
  %v818 = vmax.f32 %v816, %v817
  %v819 = vrot.slane %v818, 2
  %v820 = vmax.f32 %v818, %v819
  %v821 = vrot.slane %v820, 1
  %v822 = vmax.f32 %v820, %v821
  %v823 = vsel %vm804, %v792, -inf
  %v824 = vsel %vm804, %v793, -inf
  %v825 = vmax.f32 %v823, %v824
  %v826 = vrot.slane %v825, 4
  %v827 = vmax.f32 %v825, %v826
  %v828 = vrot.slane %v827, 2
  %v829 = vmax.f32 %v827, %v828
  %v830 = vrot.slane %v829, 1
  %v831 = vmax.f32 %v829, %v830
  %v832 = vsel %vm804, %v794, -inf
  %v833 = vsel %vm804, %v795, -inf
  %v834 = vmax.f32 %v832, %v833
  %v835 = vrot.slane %v834, 4
  %v836 = vmax.f32 %v834, %v835
  %v837 = vrot.slane %v836, 2
  %v838 = vmax.f32 %v836, %v837
  %v839 = vrot.slane %v838, 1
  %v840 = vmax.f32 %v838, %v839
  %v841 = vsel %vm804, %v796, -inf
  %v842 = vsel %vm804, %v797, -inf
  %v843 = vmax.f32 %v841, %v842
  %v844 = vrot.slane %v843, 4
  %v845 = vmax.f32 %v843, %v844
  %v846 = vrot.slane %v845, 2
  %v847 = vmax.f32 %v845, %v846
  %v848 = vrot.slane %v847, 1
  %v849 = vmax.f32 %v847, %v848
  %v850 = vsel %vm804, %v798, -inf
  %v851 = vsel %vm804, %v799, -inf
  %v852 = vmax.f32 %v850, %v851
  %v853 = vrot.slane %v852, 4
  %v854 = vmax.f32 %v852, %v853
  %v855 = vrot.slane %v854, 2
  %v856 = vmax.f32 %v854, %v855
  %v857 = vrot.slane %v856, 1
  %v858 = vmax.f32 %v856, %v857
  %v859 = vsel %vm804, %v800, -inf
  %v860 = vsel %vm804, %v801, -inf
  %v861 = vmax.f32 %v859, %v860
  %v862 = vrot.slane %v861, 4
  %v863 = vmax.f32 %v861, %v862
  %v864 = vrot.slane %v863, 2
  %v865 = vmax.f32 %v863, %v864
  %v866 = vrot.slane %v865, 1
  %v867 = vmax.f32 %v865, %v866
  %v868 = vsel %vm804, %v802, -inf
  %v869 = vsel %vm804, %v803, -inf
  %v870 = vmax.f32 %v868, %v869
  %v871 = vrot.slane %v870, 4
  %v872 = vmax.f32 %v870, %v871
  %v873 = vrot.slane %v872, 2
  %v874 = vmax.f32 %v872, %v873
  %v875 = vrot.slane %v874, 1
  %v876 = vmax.f32 %v874, %v875
  %v877 = vmax.f32 %v813, 0.0
  %v878 = vmax.f32 %v822, 0.0
  %v879 = vmax.f32 %v831, 0.0
  %v880 = vmax.f32 %v840, 0.0
  %v881 = vmax.f32 %v849, 0.0
  %v882 = vmax.f32 %v858, 0.0
  %v883 = vmax.f32 %v867, 0.0
  %v884 = vmax.f32 %v876, 0.0
  %v885 = vld [vmem:[%s1 + $0x100] sm:$0xff]
  %v886 = vld [vmem:[%s1 + $0x108] sm:$0xff]
  %v887 = vld [vmem:[%s1 + $0x110] sm:$0xff]
  %v888 = vld [vmem:[%s1 + $0x118] sm:$0xff]
  %v889 = vld [vmem:[%s1 + $0x120] sm:$0xff]
  %v890 = vld [vmem:[%s1 + $0x128] sm:$0xff]
  %v891 = vld [vmem:[%s1 + $0x168] sm:$0x1]
  %v892 = vperm.slane %v891, 0
  %vm901 = vcmask 1041409
  %v902 = vsel %vm901, %v878, %v877
  %vm903 = vcmask 1042434
  %v904 = vsel %vm903, %v879, %v902
  %vm905 = vcmask 1043459
  %v906 = vsel %vm905, %v880, %v904
  %vm907 = vcmask 1044484
  %v908 = vsel %vm907, %v881, %v906
  %vm909 = vcmask 1045509
  %v910 = vsel %vm909, %v882, %v908
  %vm911 = vcmask 1046534
  %v912 = vsel %vm911, %v883, %v910
  %vm913 = vcmask 1047559
  %v914 = vsel %vm913, %v884, %v912
  %v915 = vsel %vm804, %v914, 0
  %917 = vmatpush.msra.mxu0 0.0
  %918 = vmatpush.msra.mxu0 0.0
  %919 = vmatpush.msra.mxu0 0.0
  %920 = vmatpush.msra.mxu0 0.0
  %921 = vmatpush.msra.mxu0 0.0
  %922 = vmatpush.msra.mxu0 0.0
  %923 = vmatpush.msra.mxu0 0.0
  %924 = vmatpush.msra.mxu0 0.0
  %925 = vmatpush.msra.mxu0 0.0
  %926 = vmatpush.msra.mxu0 0.0
  %927 = vmatpush.msra.mxu0 %v890
  %928 = vmatpush.msra.mxu0 %v889
  %929 = vmatpush.msra.mxu0 %v888
  %930 = vmatpush.msra.mxu0 %v887
  %931 = vmatpush.msra.mxu0 %v886
  %932 = vmatpush.msra.mxu0 %v885
  %933 = vmatmul.f32.gmra.mxu0 %v915
  %v934 = vpop.f32.mrf.mxu0
  %v935 = vadd.f32 %v892, %v934
  %936 = vdwg.mxu0
  %v937 = vmax.f32 %v935, 0.0
  %v938 = vld [vmem:[%s1 + $0x130] sm:$0xff]
  %v939 = vld [vmem:[%s1 + $0x138] sm:$0xff]
  %v940 = vld [vmem:[%s1 + $0x140] sm:$0xff]
  %v941 = vld [vmem:[%s1 + $0x148] sm:$0xff]
  %v942 = vld [vmem:[%s1 + $0x170] sm:$0x1]
  %v943 = vperm.slane %v942, 0
  %vm944 = vcmask 261120
  %v946 = vsel %vm944, %v937, 0
  %948 = vmatpush.msra.mxu0 0.0
  %949 = vmatpush.msra.mxu0 0.0
  %950 = vmatpush.msra.mxu0 0.0
  %951 = vmatpush.msra.mxu0 0.0
  %952 = vmatpush.msra.mxu0 0.0
  %953 = vmatpush.msra.mxu0 0.0
  %954 = vmatpush.msra.mxu0 0.0
  %955 = vmatpush.msra.mxu0 0.0
  %956 = vmatpush.msra.mxu0 0.0
  %957 = vmatpush.msra.mxu0 0.0
  %958 = vmatpush.msra.mxu0 0.0
  %959 = vmatpush.msra.mxu0 0.0
  %960 = vmatpush.msra.mxu0 %v941
  %961 = vmatpush.msra.mxu0 %v940
  %962 = vmatpush.msra.mxu0 %v939
  %963 = vmatpush.msra.mxu0 %v938
  %964 = vmatmul.f32.gmra.mxu0 %v946
  %v965 = vpop.f32.mrf.mxu0
  %v966 = vadd.f32 %v943, %v965
  %967 = vdwg.mxu0
  %v968 = vsub.f32 0.0, %v966
  %v969 = vmul.f32 %v968, 1.442695
  %v970 = vpow.pop %v969
  %v971 = vadd.f32 %v970, 1.0
  %v972 = vrcp.pop %v971
  %v973 = vmul.f32 %v971, %v972
  %v974 = vsub.f32 1.0, %v973
  %v975 = vmul.f32 %v972, %v974
  %v976 = vadd.f32 %v972, %v975
  %vm977 = vweird.f32 %v971
  %vm978 = vweird.f32 %v972
  %vm979 = vmor %vm977, %vm978
  %v980 = vsel %vm979, %v972, %v976
  %v981 = vand.u32 2147483647, %v971
  %vm982 = vcmp.eq.f32.partialorder %v981, 8.507059e+37
  %v983 = vand.u32 %v971, 2147483648
  %v984 = vor.u32 1.1754944e-38, %v983
  %v985 = vsel %vm982, %v984, %v980
  %v986 = vmul.f32 1.0, %v985
  %987 = vst [vmem:[%s2] sm:$0xff] %v986
  // Predicated region
  $region10: #{cnn_classifier_forward.1} parent=0 // pred_check
    _
  $region11: #{cnn_classifier_forward.1} parent=0 // pred_check_branch
    %989 = sbr.rel (0) target = $region13
  $region12: #{cnn_classifier_forward.1} parent=0 // pred_region
    _
  $region13: #{cnn_classifier_forward.1} parent=0 // pred_fallthru
    _
  // Predicated region
  $region14: #{cnn_classifier_forward.1} parent=0 // pred_check
    _
  $region15: #{cnn_classifier_forward.1} parent=0 // pred_check_branch
    %991 = sbr.rel (0) target = $region17
  $region16: #{cnn_classifier_forward.1} parent=0 // pred_region
    _
  $region17: #{cnn_classifier_forward.1} parent=0 // pred_fallthru
    _

</llo_original>
